<compile_context>
chip_gen: v5e
topology: v5e:2x2
jax: 0.10.0
libtpu: 0.0.40
codegen_flags: <defaults>
</compile_context>

<pallas_src>
import jax
import jax.numpy as jnp
from jax.experimental import pallas as pl
from jax.experimental.pallas import tpu as pltpu

BN_EPS = 1e-5
DECODER_CHANNELS = [(512, 512), (512, 256), (256, 128), (128, 64), (64, 32)]
MIX_CHANNELS = {'x1': 64, 'x2': 128, 'x3': 256, 'x4': 512, 'x5': 512}
_VMEM_LIMIT = 40 * 1024 * 1024      # safe on v7x (64 MiB physical VMEM)


# ---------------- Pallas kernels ----------------

def _fused_stage_kernel(x_ref, w_ref, p_ref, res_ref, o_ref):
    # o = BN(relu(x @ w + conv_bias)) + residual   (BN folded to scale/shift)
    # x / w are bf16 (MXU-native); accumulation + epilogue in f32.
    y = jnp.dot(x_ref[...], w_ref[...], preferred_element_type=jnp.float32)
    p = p_ref[...]                                     # (3, N): [bias; scale; shift]
    y = jnp.maximum(y + p[0:1, :], 0.0)
    y = y * p[1:2, :] + p[2:3, :] + res_ref[...].astype(jnp.float32)
    o_ref[...] = y.astype(o_ref.dtype)


def _final_stage_kernel(x_ref, w_ref, p_ref, fw_ref, fb_ref, o_ref):
    # Last decoder stage (no residual) fused with the final 1x1 conv.
    # fw/fb are zero-padded to 128 lanes so the output store is lane-dense.
    y = jnp.dot(x_ref[...], w_ref[...], preferred_element_type=jnp.float32)
    p = p_ref[...]
    y = jnp.maximum(y + p[0:1, :], 0.0)
    y = y * p[1:2, :] + p[2:3, :]
    z = jnp.dot(y.astype(jnp.bfloat16), fw_ref[...],
                preferred_element_type=jnp.float32)
    o_ref[...] = z + fb_ref[...]


# ---------------- pallas_call wrappers ----------------

def _pick_tm(m, max_tm=1024):
    if m <= max_tm:
        return m
    tm = max_tm
    while (m % tm) or (tm % 8):
        tm //= 2
        if tm < 8:
            return m
    return tm


def _cparams(grid_rank):
    return pltpu.CompilerParams(
        dimension_semantics=("parallel",) * grid_rank,
        vmem_limit_bytes=_VMEM_LIMIT)


def fused_stage(patches, wmat, p3, res_par):
    M, K = patches.shape
    N = wmat.shape[1]
    tm = _pick_tm(M)
    return pl.pallas_call(
        _fused_stage_kernel,
        out_shape=jax.ShapeDtypeStruct((M, N), jnp.bfloat16),
        grid=(M // tm,),
        in_specs=[
            pl.BlockSpec((tm, K), lambda i: (i, 0)),
            pl.BlockSpec((K, N), lambda i: (0, 0)),
            pl.BlockSpec((3, N), lambda i: (0, 0)),
            pl.BlockSpec((tm, N), lambda i: (i, 0)),
        ],
        out_specs=pl.BlockSpec((tm, N), lambda i: (i, 0)),
        compiler_params=_cparams(1),
    )(patches, wmat, p3, res_par)


def final_stage(patches, wmat, p3, fw_blk, fb):
    M, K = patches.shape
    N = wmat.shape[1]
    NO = fw_blk.shape[1]                        # padded to a multiple of 128
    tm = _pick_tm(M)
    return pl.pallas_call(
        _final_stage_kernel,
        out_shape=jax.ShapeDtypeStruct((M, NO), jnp.float32),
        grid=(M // tm,),
        in_specs=[
            pl.BlockSpec((tm, K), lambda i: (i, 0)),
            pl.BlockSpec((K, N), lambda i: (0, 0)),
            pl.BlockSpec((3, N), lambda i: (0, 0)),
            pl.BlockSpec((N, NO), lambda i: (0, 0)),
            pl.BlockSpec((1, NO), lambda i: (0, 0)),
        ],
        out_specs=pl.BlockSpec((tm, NO), lambda i: (i, 0)),
        compiler_params=_cparams(1),
    )(patches, wmat, p3, fw_blk, fb)


# ---------------- plain-JAX glue (layout shuffles, weight packing) ----------------

def _nhwc_to_patches(x):
    """(B,H,W,C) -> (B*H*W, 4C): 2x2 down/right neighbourhood, zero-pad bottom/right."""
    B, H, W, C = x.shape
    xp = jnp.pad(x, ((0, 0), (0, 1), (0, 1), (0, 0)))
    taps = [xp[:, da:da + H, db:db + W, :] for da in (0, 1) for db in (0, 1)]
    patches = jnp.concatenate(taps, axis=-1)
    return patches.reshape(B * H * W, 4 * C), (B, H, W)


def _nhwc_to_parity(x):
    """(B,2H,2W,C) -> (B*H*W, 4C); column blocks = output parities [ee|eo|oe|oo]."""
    B, H2, W2, C = x.shape
    H, W = H2 // 2, W2 // 2
    y = x.reshape(B, H, 2, W, 2, C).transpose(0, 1, 3, 2, 4, 5)
    return y.reshape(B * H * W, 4 * C)


def _parity_to_nhwc(y2d, B, H, W):
    """(B*H*W, 4C) parity layout -> (B, 2H, 2W, C)."""
    C = y2d.shape[1] // 4
    y = y2d.reshape(B, H, W, 2, 2, C).transpose(0, 1, 3, 2, 4, 5)
    return y.reshape(B, 2 * H, 2 * W, C)


def _parity_to_patches(y2d, B, H, W):
    """Compose un-parity of a stage output with the next stage's 2x2 patch gather.

    (B*H*W, 4C) parity -> (B*(2H)*(2W), 4C) patches.  One fused XLA shuffle; the
    NHWC intermediate is never stored between Pallas stages.
    """
    C = y2d.shape[1] // 4
    x = (y2d.reshape(B, H, W, 2, 2, C)
            .transpose(0, 1, 3, 2, 4, 5)
            .reshape(B, 2 * H, 2 * W, C))
    xp = jnp.pad(x, ((0, 0), (0, 1), (0, 1), (0, 0)))
    taps = [xp[:, da:da + 2 * H, db:db + 2 * W, :] for da in (0, 1) for db in (0, 1)]
    patches = jnp.concatenate(taps, axis=-1)
    return patches.reshape(B * 2 * H * 2 * W, 4 * C), (B, 2 * H, 2 * W)


def _convT_parity_weight(w):
    """PyTorch ConvTranspose2d weight (Cin, Cout, 3, 3) -> (4*Cin, 4*Cout).

    Row blocks = input taps x[a,b], x[a,b+1], x[a+1,b], x[a+1,b+1];
    col blocks = output parities (2a,2b), (2a,2b+1), (2a+1,2b), (2a+1,2b+1).
    Derived from oy = 2*i - 1 + ky (stride 2, pad 1, output_pad 1).
    """
    cin, cout = w.shape[0], w.shape[1]
    z = jnp.zeros((cin, cout), w.dtype)
    g = lambda ky, kx: w[:, :, ky, kx]
    rows = [
        jnp.concatenate([g(1, 1), g(1, 2), g(2, 1), g(2, 2)], axis=1),  # x[a,   b  ]
        jnp.concatenate([z,       g(1, 0), z,       g(2, 0)], axis=1),  # x[a,   b+1]
        jnp.concatenate([z,       z,       g(0, 1), g(0, 2)], axis=1),  # x[a+1, b  ]
        jnp.concatenate([z,       z,       z,       g(0, 0)], axis=1),  # x[a+1, b+1]
    ]
    return jnp.concatenate(rows, axis=0)


# ---------------- deterministic parameter init ----------------

def init_params(key, n_class):
    params = {'decoder': [], 'mix': {}}
    for cin, cout in DECODER_CHANNELS:
        key, k1, k2, k3, k4, k5, k6 = jax.random.split(key, 7)
        w = jax.random.normal(k1, (cin, cout, 3, 3), jnp.float32) / jnp.sqrt(9.0 * cin)
        b = 0.1 * jax.random.normal(k2, (cout,), jnp.float32)
        gamma = 1.0 + 0.1 * jax.random.normal(k3, (cout,), jnp.float32)
        beta = 0.1 * jax.random.normal(k4, (cout,), jnp.float32)
        rmean = 0.1 * jax.random.normal(k5, (cout,), jnp.float32)
        rvar = 1.0 + 0.1 * jax.random.uniform(k6, (cout,), jnp.float32)
        scale = gamma / jnp.sqrt(rvar + BN_EPS)
        shift = beta - rmean * scale
        p3 = jnp.stack([jnp.tile(b, 4), jnp.tile(scale, 4), jnp.tile(shift, 4)], axis=0)
        params['decoder'].append({
            'wmat': _convT_parity_weight(w).astype(jnp.bfloat16),   # (4cin, 4cout)
            'p3': p3.astype(jnp.float32),                            # (3, 4cout)
        })

    # Final 1x1 conv (32 -> n_class), block-diagonal per parity, padded to a
    # lane-dense (128, NO) weight so the fused final-stage store is unmasked.
    key, kf1, kf2 = jax.random.split(key, 3)
    wf = jax.random.normal(kf1, (n_class, 32, 1, 1), jnp.float32) / jnp.sqrt(32.0)
    fb = 0.1 * jax.random.normal(kf2, (n_class,), jnp.float32)
    fwm = jnp.transpose(wf[:, :, 0, 0], (1, 0))                      # (32, n_class)
    NO = max(128, ((4 * n_class + 127) // 128) * 128)
    fblk = jnp.zeros((4 * 32, NO), jnp.float32)
    for p in range(4):
        fblk = fblk.at[p * 32:(p + 1) * 32, p * n_class:(p + 1) * n_class].set(fwm)
    fbpad = jnp.zeros((1, NO), jnp.float32).at[0, :4 * n_class].set(jnp.tile(fb, 4))
    params['final_w_blk'] = fblk.astype(jnp.bfloat16)
    params['final_b'] = fbpad

    for name, cout in MIX_CHANNELS.items():
        key, km = jax.random.split(key)
        wm = jax.random.normal(km, (cout, n_class, 1, 1), jnp.float32) / jnp.sqrt(float(n_class))
        params['mix'][name] = jnp.transpose(wm[:, :, 0, 0], (1, 0))   # (n_class, cout) f32
    return params


# ---------------- network1 forward ----------------

def network1_forward(params, outputs, cam_in=False):
    """outputs = [x1, x2, x3, x4, x5], each NCHW (finest -> coarsest). Returns NCHW."""
    n_class = params['mix']['x1'].shape[0]
    feats = [jnp.transpose(o, (0, 2, 3, 1)).astype(jnp.float32) for o in outputs]  # NHWC f32
    if cam_in:
        # K = n_class is lane-sparse: plain XLA einsum (per review), no Pallas call.
        feats = [jnp.einsum('bhwc,cd->bhwd', f, params['mix'][name])
                 for f, name in zip(feats, ('x1', 'x2', 'x3', 'x4', 'x5'))]
    x1, x2, x3, x4, x5 = feats

    # First stage input: patch-gather x5 (bf16 for the MXU).
    patches, (B, H, W) = _nhwc_to_patches(x5.astype(jnp.bfloat16))

    for stage, res in zip(params['decoder'][:4], (x4, x3, x2, x1)):
        res_par = _nhwc_to_parity(res)                                # f32 skip
        y2d = fused_stage(patches, stage['wmat'], stage['p3'], res_par)
        patches, (B, H, W) = _parity_to_patches(y2d, B, H, W)         # fused shuffle

    # Last decoder stage (no residual), fused with the final 1x1 conv.
    stage = params['decoder'][4]
    y2d = final_stage(patches, stage['wmat'], stage['p3'],
                      params['final_w_blk'], params['final_b'])
    out_nhwc = _parity_to_nhwc(y2d[:, :4 * n_class], B, H, W)
    return jnp.transpose(out_nhwc, (0, 3, 1, 2))                      # NCHW


# ---------------- reference (for the parity-decomposition self-check) ----------------

def _ref_stage(x_nhwc, w, b, scale, shift, res_nhwc):
    """Direct ConvTranspose2d(k3,s2,p1,op1) -> +bias -> ReLU -> BN -> +skip."""
    B, H, W, _ = x_nhwc.shape
    Cout = w.shape[1]
    y = jnp.zeros((B, 2 * H + 1, 2 * W + 1, Cout), jnp.float32)
    for ky in range(3):
        for kx in range(3):
            contrib = jnp.einsum('bhwc,cd->bhwd', x_nhwc, w[:, :, ky, kx],
                                 precision=jax.lax.Precision.HIGHEST)
            y = y.at[:, ky:ky + 2 * H:2, kx:kx + 2 * W:2, :].add(contrib)
    y = y[:, 1:2 * H + 1, 1:2 * W + 1, :] + b
    y = jnp.maximum(y, 0.0) * scale + shift
    return y + res_nhwc


if __name__ == "__main__":
    n_class = 4
    B = 2
    key = jax.random.PRNGKey(0)
    kp, kx = jax.random.split(key)
    params = init_params(kp, n_class)
    ks = jax.random.split(kx, 5)

    # --- unit check: parity-decomposed ConvT stage vs direct reference ---
    kt = jax.random.split(jax.random.PRNGKey(0), 6)
    ci, co, Ht, Wt, Bt = 64, 32, 4, 4, 1
    xt = jax.random.normal(kt[0], (Bt, Ht, Wt, ci), jnp.float32)
    wt = jax.random.normal(kt[1], (ci, co, 3, 3), jnp.float32) / jnp.sqrt(9.0 * ci)
    bt = 0.1 * jax.random.normal(kt[2], (co,), jnp.float32)
    sct = 1.0 + 0.1 * jax.random.normal(kt[3], (co,), jnp.float32)
    sht = 0.1 * jax.random.normal(kt[4], (co,), jnp.float32)
    rt = jax.random.normal(kt[5], (Bt, 2 * Ht, 2 * Wt, co), jnp.float32)
    ref = _ref_stage(xt.astype(jnp.bfloat16).astype(jnp.float32),
                     wt.astype(jnp.bfloat16).astype(jnp.float32), bt, sct, sht, rt)
    pt, _ = _nhwc_to_patches(xt.astype(jnp.bfloat16))
    p3t = jnp.stack([jnp.tile(bt, 4), jnp.tile(sct, 4), jnp.tile(sht, 4)], axis=0)
    got2d = fused_stage(pt, _convT_parity_weight(wt).astype(jnp.bfloat16), p3t,
                        _nhwc_to_parity(rt))
    got = _parity_to_nhwc(got2d.astype(jnp.float32), Bt, Ht, Wt)
    err = float(jnp.max(jnp.abs(got - ref)))
    assert err < 1e-1, f"parity ConvT decomposition mismatch: max abs err {err}"

    fwd = jax.jit(network1_forward, static_argnames=("cam_in",))

    # cam_in=False path: encoder-style feature pyramid (x1 finest ... x5 coarsest)
    outputs = [
        jax.random.normal(ks[0], (B, 64, 32, 32), jnp.float32),
        jax.random.normal(ks[1], (B, 128, 16, 16), jnp.float32),
        jax.random.normal(ks[2], (B, 256, 8, 8), jnp.float32),
        jax.random.normal(ks[3], (B, 512, 4, 4), jnp.float32),
        jax.random.normal(ks[4], (B, 512, 2, 2), jnp.float32),
    ]
    mask = fwd(params, outputs, cam_in=False)
    jax.block_until_ready(mask)
    assert mask.shape == (B, n_class, 64, 64), mask.shape

    # cam_in=True path: output[i] are n_class-channel CAM maps.
    cam_outputs = [
        jax.random.normal(ks[0], (B, n_class, 32, 32), jnp.float32),
        jax.random.normal(ks[1], (B, n_class, 16, 16), jnp.float32),
        jax.random.normal(ks[2], (B, n_class, 8, 8), jnp.float32),
        jax.random.normal(ks[3], (B, n_class, 4, 4), jnp.float32),
        jax.random.normal(ks[4], (B, n_class, 2, 2), jnp.float32),
    ]
    mask_cam = fwd(params, cam_outputs, cam_in=True)
    jax.block_until_ready(mask_cam)
    assert mask_cam.shape == (B, n_class, 64, 64), mask_cam.shape

    print("KERNEL_OK")
</pallas_src>

<mosaic_0001>
module attributes {stable_mosaic.version = 11 : i64} {
  func.func @_fused_stage_kernel(%arg0: i32, %arg1: memref<16x256xbf16, #tpu.memory_space<vmem>>, %arg2: memref<256x128xbf16, #tpu.memory_space<vmem>>, %arg3: memref<3x128xf32, #tpu.memory_space<vmem>>, %arg4: memref<16x128xf32, #tpu.memory_space<vmem>>, %arg5: memref<16x128xbf16, #tpu.memory_space<vmem>>) attributes {dimension_semantics = [#tpu.dimension_semantics<parallel>], iteration_bounds = array<i64: 1>, scalar_prefetch = 0 : i64, scratch_operands = 0 : i64, tpu.core_type = #tpu.core_type<tc>, window_params = [{transform_indices = @transform_0, window_bounds = array<i64: 16, 256>}, {pipeline_mode = #tpu.pipeline_mode<synchronous>, transform_indices = @transform_1, window_bounds = array<i64: 256, 128>}, {pipeline_mode = #tpu.pipeline_mode<synchronous>, transform_indices = @transform_2, window_bounds = array<i64: 3, 128>}, {transform_indices = @transform_3, window_bounds = array<i64: 16, 128>}, {transform_indices = @transform_4, window_bounds = array<i64: 16, 128>}]} {
    %c0 = arith.constant 0 : index
    %c0_0 = arith.constant 0 : index
    %0 = vector.load %arg1[%c0, %c0_0] : memref<16x256xbf16, #tpu.memory_space<vmem>>, vector<16x256xbf16>
    %c0_1 = arith.constant 0 : index
    %c0_2 = arith.constant 0 : index
    %1 = vector.load %arg2[%c0_1, %c0_2] : memref<256x128xbf16, #tpu.memory_space<vmem>>, vector<256x128xbf16>
    %cst = arith.constant dense<0.000000e+00> : vector<16x128xf32>
    %2 = tpu.matmul %0, %1, %cst {dimension_numbers = #tpu.dot_dimension_numbers<[1], [0], [0], [1], [0, 0, 1, 1], [], []>} : vector<16x256xbf16>, vector<256x128xbf16>, vector<16x128xf32> -> vector<16x128xf32>
    %c0_3 = arith.constant 0 : index
    %c0_4 = arith.constant 0 : index
    %3 = vector.load %arg3[%c0_3, %c0_4] : memref<3x128xf32, #tpu.memory_space<vmem>>, vector<3x128xf32>
    %4 = vector.extract_strided_slice %3 {offsets = [0, 0], sizes = [1, 128], strides = [1, 1]} : vector<3x128xf32> to vector<1x128xf32>
    %5 = vector.broadcast %4 : vector<1x128xf32> to vector<16x128xf32>
    %6 = arith.addf %2, %5 : vector<16x128xf32>
    %cst_5 = arith.constant 0.000000e+00 : f32
    %7 = vector.broadcast %cst_5 : f32 to vector<16x128xf32>
    %8 = arith.maximumf %6, %7 : vector<16x128xf32>
    %9 = vector.extract_strided_slice %3 {offsets = [1, 0], sizes = [1, 128], strides = [1, 1]} : vector<3x128xf32> to vector<1x128xf32>
    %10 = vector.broadcast %9 : vector<1x128xf32> to vector<16x128xf32>
    %11 = arith.mulf %8, %10 : vector<16x128xf32>
    %12 = vector.extract_strided_slice %3 {offsets = [2, 0], sizes = [1, 128], strides = [1, 1]} : vector<3x128xf32> to vector<1x128xf32>
    %13 = vector.broadcast %12 : vector<1x128xf32> to vector<16x128xf32>
    %14 = arith.addf %11, %13 : vector<16x128xf32>
    %c0_6 = arith.constant 0 : index
    %c0_7 = arith.constant 0 : index
    %15 = vector.load %arg4[%c0_6, %c0_7] : memref<16x128xf32, #tpu.memory_space<vmem>>, vector<16x128xf32>
    %16 = arith.addf %14, %15 : vector<16x128xf32>
    %17 = arith.truncf %16 : vector<16x128xf32> to vector<16x128xbf16>
    %c0_8 = arith.constant 0 : index
    %c0_9 = arith.constant 0 : index
    %18 = vector.load %arg5[%c0_8, %c0_9] : memref<16x128xbf16, #tpu.memory_space<vmem>>, vector<16x128xbf16>
    tpu.vector_store %arg5[%c0_8, %c0_9], %17 {strides = array<i32>} : memref<16x128xbf16, #tpu.memory_space<vmem>>, vector<16x128xbf16>,
    return
  }
  func.func @transform_0(%arg0: i32) -> (i32, i32) {
    %c0_i32 = arith.constant 0 : i32
    %c0_i32_0 = arith.constant 0 : i32
    return %arg0, %c0_i32 : i32, i32
  }
  func.func @transform_1(%arg0: i32) -> (i32, i32) {
    %c0_i32 = arith.constant 0 : i32
    %c0_i32_0 = arith.constant 0 : i32
    %c0_i32_1 = arith.constant 0 : i32
    return %c0_i32, %c0_i32_0 : i32, i32
  }
  func.func @transform_2(%arg0: i32) -> (i32, i32) {
    %c0_i32 = arith.constant 0 : i32
    %c0_i32_0 = arith.constant 0 : i32
    %c0_i32_1 = arith.constant 0 : i32
    return %c0_i32, %c0_i32_0 : i32, i32
  }
  func.func @transform_3(%arg0: i32) -> (i32, i32) {
    %c0_i32 = arith.constant 0 : i32
    %c0_i32_0 = arith.constant 0 : i32
    return %arg0, %c0_i32 : i32, i32
  }
  func.func @transform_4(%arg0: i32) -> (i32, i32) {
    %c0_i32 = arith.constant 0 : i32
    %c0_i32_0 = arith.constant 0 : i32
    return %arg0, %c0_i32 : i32, i32
  }
}

</mosaic_0001>

<llo_original>
// kernel: tpu_custom_call.1
$region0: #{tpu_custom_call.1}
  #allocation0 [shape = 'u32[]', space=smem, size = 0x4, offset = 0x4, fixed_abs, tag = 'smem constant byte address 0x4 - core index']
  #allocation1 [shape = 'u32[72,128]{1,0:T(1,128)}', space=vmem, size = 0x9000, scoped, tag = 'internal scratch']
  %s0 = inlined_call_operand.hbm [shape: bf16[16,256], index: 0, kind: input, shape index: {}]
  %s1 = inlined_call_operand.hbm [shape: bf16[256,128], index: 1, kind: input, shape index: {}]
  %s2 = inlined_call_operand.hbm [shape: f32[3,128], index: 2, kind: input, shape index: {}]
  %s3 = inlined_call_operand.hbm [shape: f32[16,128], index: 3, kind: input, shape index: {}]
  %s4 = inlined_call_operand.hbm [shape: bf16[16,128], index: 4, kind: output, shape index: {}]
  %s5 = sld [smem:[#allocation0]]
  $region42: #{tpu_custom_call.1} parent=0
    _
  %s7 = ssub.s32 1, %s5
  %s8 = scalar_select 0, %s7, %s5
  $region1: #{tpu_custom_call.1} parent=0
    #allocation2 [shape = 'u8[8192]{0}', space=vmem, size = 0x2000, scoped, tag = 'input window, operand 0, single buffered']
    #allocation3 [shape = 's32[1]{0}', space=sflag, size = 0x4, scoped, tag = 'scoped memory for tpu_custom_call.1']
    #allocation4 [shape = 's32[1]{0}', space=sflag, size = 0x4, scoped, tag = 'scoped memory for tpu_custom_call.1']
    #allocation5 [shape = 'u8[65536]{0}', space=vmem, size = 0x10000, scoped, tag = 'input window, operand 1, single buffered']
    #allocation6 [shape = 's32[1]{0}', space=sflag, size = 0x4, scoped, tag = 'scoped memory for tpu_custom_call.1']
    #allocation7 [shape = 'u8[2048]{0}', space=vmem, size = 0x800, scoped, tag = 'input window, operand 2, single buffered']
    #allocation8 [shape = 'u8[8192]{0}', space=vmem, size = 0x2000, scoped, tag = 'input window, operand 3, single buffered']
    #allocation9 [shape = 's32[1]{0}', space=sflag, size = 0x4, scoped, tag = 'scoped memory for tpu_custom_call.1']
    #allocation10 [shape = 'u8[4096]{0}', space=vmem, size = 0x1000, scoped, tag = 'output window, operand 0, single buffered']
    %9 = vsyncpa [#allocation3], 0
    %10 = vsyncpa [#allocation6], 0
    %11 = vsyncpa [#allocation9], 0
    %12 = vsyncpa [#allocation4], 0
    // Predicated region
    $region2: #{tpu_custom_call.1} parent=1 // pred_check
      _
    $region3: #{tpu_custom_call.1} parent=1 // pred_check_branch
      %14 = sbr.rel (0) target = $region5
    $region4: #{tpu_custom_call.1} parent=1 // pred_region
      %16 = vsyncadd [#allocation3], 0
      %s17 = sshll.u32 %s0, 4
      %s18 = int_to_ptr.hbm [resolvable:$true] %s17
      %s19 = sshll.u32 [#allocation2], 4
      %s20 = int_to_ptr.vmem [resolvable:$true] %s19
      %25 = dma.hbm_to_vmem [thread:$0]  %s18, 256, %s20, [#allocation3], 128, 128, 8
    $region5: #{tpu_custom_call.1} parent=1 // pred_fallthru
      _
    // Predicated region
    $region6: #{tpu_custom_call.1} parent=1 // pred_check
      _
    $region7: #{tpu_custom_call.1} parent=1 // pred_check_branch
      %27 = sbr.rel (0) target = $region9
    $region8: #{tpu_custom_call.1} parent=1 // pred_region
      %29 = vsyncadd [#allocation6], 0
      %s30 = sshll.u32 %s1, 4
      %s31 = int_to_ptr.hbm [resolvable:$true] %s30
      %s32 = sshll.u32 [#allocation5], 4
      %s33 = int_to_ptr.vmem [resolvable:$true] %s32
      %38 = dma.hbm_to_vmem [thread:$0]  %s31, 2048, %s33, [#allocation6], 64, 64, 4
    $region9: #{tpu_custom_call.1} parent=1 // pred_fallthru
      _
    // Predicated region
    $region10: #{tpu_custom_call.1} parent=1 // pred_check
      _
    $region11: #{tpu_custom_call.1} parent=1 // pred_check_branch
      %40 = sbr.rel (0) target = $region13
    $region12: #{tpu_custom_call.1} parent=1 // pred_region
      %42 = vsyncadd [#allocation6], 0
      %s44 = sshll.u32 %s2, 4
      %s45 = int_to_ptr.hbm [resolvable:$true] %s44
      %s46 = sshll.u32 [#allocation7], 4
      %s47 = int_to_ptr.vmem [resolvable:$true] %s46
      %49 = dma.hbm_to_vmem [thread:$0]  %s45, 64, %s47, [#allocation6]
    $region13: #{tpu_custom_call.1} parent=1 // pred_fallthru
      _
    // Predicated region
    $region14: #{tpu_custom_call.1} parent=1 // pred_check
      _
    $region15: #{tpu_custom_call.1} parent=1 // pred_check_branch
      %51 = sbr.rel (0) target = $region17
    $region16: #{tpu_custom_call.1} parent=1 // pred_region
      %53 = vsyncadd [#allocation9], 0
      %s54 = sshll.u32 %s3, 4
      %s55 = int_to_ptr.hbm [resolvable:$true] %s54
      %s56 = sshll.u32 [#allocation8], 4
      %s57 = int_to_ptr.vmem [resolvable:$true] %s56
      %62 = dma.hbm_to_vmem [thread:$0]  %s55, 256, %s57, [#allocation9], 128, 128, 8
    $region17: #{tpu_custom_call.1} parent=1 // pred_fallthru
      _
    // Predicated region
    $region18: #{tpu_custom_call.1} parent=1 // pred_check
      _
    $region19: #{tpu_custom_call.1} parent=1 // pred_check_branch
      %64 = sbr.rel (0) target = $region21
    $region20: #{tpu_custom_call.1} parent=1 // pred_region
      %66 = dma.done [#allocation3], 256
    $region21: #{tpu_custom_call.1} parent=1 // pred_fallthru
      _
    // Predicated region
    $region22: #{tpu_custom_call.1} parent=1 // pred_check
      _
    $region23: #{tpu_custom_call.1} parent=1 // pred_check_branch
      %68 = sbr.rel (0) target = $region25
    $region24: #{tpu_custom_call.1} parent=1 // pred_region
      %70 = dma.done [#allocation6], 2048
    $region25: #{tpu_custom_call.1} parent=1 // pred_fallthru
      _
    // Predicated region
    $region26: #{tpu_custom_call.1} parent=1 // pred_check
      _
    $region27: #{tpu_custom_call.1} parent=1 // pred_check_branch
      %72 = sbr.rel (0) target = $region29
    $region28: #{tpu_custom_call.1} parent=1 // pred_region
      %74 = dma.done [#allocation6], 64
    $region29: #{tpu_custom_call.1} parent=1 // pred_fallthru
      _
    // Predicated region
    $region30: #{tpu_custom_call.1} parent=1 // pred_check
      _
    $region31: #{tpu_custom_call.1} parent=1 // pred_check_branch
      %76 = sbr.rel (0) target = $region33
    $region32: #{tpu_custom_call.1} parent=1 // pred_region
      %78 = dma.done [#allocation9], 256
    $region33: #{tpu_custom_call.1} parent=1 // pred_fallthru
      _
    %v79 = vld [vmem:[#allocation2] sm:$0xff]
    %v80 = vld [vmem:[#allocation2 + $0x8] sm:$0xff]
    %v81 = vld [vmem:[#allocation5] sm:$0xf]
    %v82 = vld [vmem:[#allocation5 + $0x4] sm:$0xf]
    %v83 = vld [vmem:[#allocation5 + $0x8] sm:$0xf]
    %v84 = vld [vmem:[#allocation5 + $0xc] sm:$0xf]
    %v85 = vld [vmem:[#allocation5 + $0x10] sm:$0xf]
    %v86 = vld [vmem:[#allocation5 + $0x14] sm:$0xf]
    %v87 = vld [vmem:[#allocation5 + $0x18] sm:$0xf]
    %v88 = vld [vmem:[#allocation5 + $0x1c] sm:$0xf]
    %v89 = vld [vmem:[#allocation5 + $0x20] sm:$0xf]
    %v90 = vld [vmem:[#allocation5 + $0x24] sm:$0xf]
    %v91 = vld [vmem:[#allocation5 + $0x28] sm:$0xf]
    %v92 = vld [vmem:[#allocation5 + $0x2c] sm:$0xf]
    %v93 = vld [vmem:[#allocation5 + $0x30] sm:$0xf]
    %v94 = vld [vmem:[#allocation5 + $0x34] sm:$0xf]
    %v95 = vld [vmem:[#allocation5 + $0x38] sm:$0xf]
    %v96 = vld [vmem:[#allocation5 + $0x3c] sm:$0xf]
    %v97 = vld [vmem:[#allocation5 + $0x40] sm:$0xf]
    %v98 = vld [vmem:[#allocation5 + $0x44] sm:$0xf]
    %v99 = vld [vmem:[#allocation5 + $0x48] sm:$0xf]
    %v100 = vld [vmem:[#allocation5 + $0x4c] sm:$0xf]
    %v101 = vld [vmem:[#allocation5 + $0x50] sm:$0xf]
    %v102 = vld [vmem:[#allocation5 + $0x54] sm:$0xf]
    %v103 = vld [vmem:[#allocation5 + $0x58] sm:$0xf]
    %v104 = vld [vmem:[#allocation5 + $0x5c] sm:$0xf]
    %v105 = vld [vmem:[#allocation5 + $0x60] sm:$0xf]
    %v106 = vld [vmem:[#allocation5 + $0x64] sm:$0xf]
    %v107 = vld [vmem:[#allocation5 + $0x68] sm:$0xf]
    %v108 = vld [vmem:[#allocation5 + $0x6c] sm:$0xf]
    %v109 = vld [vmem:[#allocation5 + $0x70] sm:$0xf]
    %v110 = vld [vmem:[#allocation5 + $0x74] sm:$0xf]
    %v111 = vld [vmem:[#allocation5 + $0x78] sm:$0xf]
    %v112 = vld [vmem:[#allocation5 + $0x7c] sm:$0xf]
    %v113 = vld [vmem:[#allocation7] sm:$0x7]
    %v114 = vperm.slane %v113, 0
    %v117 = vunpack.c.l.b16 %v79
    %v118 = vunpack.c.h.b16 %v79
    %v119 = vunpack.c.l.b16 %v80
    %v120 = vunpack.c.h.b16 %v80
    %v121 = vpack.c.b16 %v119, %v117
    %v122 = vpack.c.b16 %v120, %v118
    %v157 = vunpack.c.l.b16 %v81
    %v158 = vunpack.c.l.b16 %v82
    %v159 = vunpack.c.l.b16 %v83
    %v160 = vunpack.c.l.b16 %v84
    %v161 = vunpack.c.l.b16 %v85
    %v162 = vunpack.c.l.b16 %v86
    %v163 = vunpack.c.l.b16 %v87
    %v164 = vunpack.c.l.b16 %v88
    %v165 = vunpack.c.l.b16 %v89
    %v166 = vunpack.c.l.b16 %v90
    %v167 = vunpack.c.l.b16 %v91
    %v168 = vunpack.c.l.b16 %v92
    %v169 = vunpack.c.l.b16 %v93
    %v170 = vunpack.c.l.b16 %v94
    %v171 = vunpack.c.l.b16 %v95
    %v172 = vunpack.c.l.b16 %v96
    %v173 = vunpack.c.l.b16 %v97
    %v174 = vunpack.c.l.b16 %v98
    %v175 = vunpack.c.l.b16 %v99
    %v176 = vunpack.c.l.b16 %v100
    %v177 = vunpack.c.l.b16 %v101
    %v178 = vunpack.c.l.b16 %v102
    %v179 = vunpack.c.l.b16 %v103
    %v180 = vunpack.c.l.b16 %v104
    %v181 = vunpack.c.l.b16 %v105
    %v182 = vunpack.c.l.b16 %v106
    %v183 = vunpack.c.l.b16 %v107
    %v184 = vunpack.c.l.b16 %v108
    %v185 = vunpack.c.l.b16 %v109
    %v186 = vunpack.c.l.b16 %v110
    %v187 = vunpack.c.l.b16 %v111
    %v188 = vunpack.c.l.b16 %v112
    %v189 = vpack.c.b16 %v158, %v157
    %v190 = vpack.c.b16 %v160, %v159
    %v191 = vpack.c.b16 %v162, %v161
    %v192 = vpack.c.b16 %v164, %v163
    %v193 = vpack.c.b16 %v166, %v165
    %v194 = vpack.c.b16 %v168, %v167
    %v195 = vpack.c.b16 %v170, %v169
    %v196 = vpack.c.b16 %v172, %v171
    %v197 = vpack.c.b16 %v174, %v173
    %v198 = vpack.c.b16 %v176, %v175
    %v199 = vpack.c.b16 %v178, %v177
    %v200 = vpack.c.b16 %v180, %v179
    %v201 = vpack.c.b16 %v182, %v181
    %v202 = vpack.c.b16 %v184, %v183
    %v203 = vpack.c.b16 %v186, %v185
    %v204 = vpack.c.b16 %v188, %v187
    %221 = vmatpush.bf16.msra.mxu0 %v196
    %222 = vmatpush.bf16.msra.mxu0 %v195
    %223 = vmatpush.bf16.msra.mxu0 %v194
    %224 = vmatpush.bf16.msra.mxu0 %v193
    %225 = vmatpush.bf16.msra.mxu0 %v192
    %226 = vmatpush.bf16.msra.mxu0 %v191
    %227 = vmatpush.bf16.msra.mxu0 %v190
    %228 = vmatpush.bf16.msra.mxu0 %v189
    %229 = vmatmul.bf16.gmra.mxu0 %v121
    %v230 = vpop.f32.mrf.mxu0
    %v231 = vadd.f32 %v114, %v230
    %v232 = vpop.f32.mrf.mxu0
    %v233 = vadd.f32 %v114, %v232
    %234 = vdwg.mxu0
    %235 = vmatpush.bf16.msra.mxu0 %v204
    %236 = vmatpush.bf16.msra.mxu0 %v203
    %237 = vmatpush.bf16.msra.mxu0 %v202
    %238 = vmatpush.bf16.msra.mxu0 %v201
    %239 = vmatpush.bf16.msra.mxu0 %v200
    %240 = vmatpush.bf16.msra.mxu0 %v199
    %241 = vmatpush.bf16.msra.mxu0 %v198
    %242 = vmatpush.bf16.msra.mxu0 %v197
    %243 = vmatmul.bf16.gmra.mxu0 %v122
    %v244 = vpop.f32.mrf.mxu0
    %v245 = vadd.f32 %v231, %v244
    %v246 = vpop.f32.mrf.mxu0
    %v247 = vadd.f32 %v233, %v246
    %248 = vdwg.mxu0
    %v249 = vmax.f32 %v245, 0.0
    %v250 = vmax.f32 %v247, 0.0
    %v251 = vperm.slane %v113, 1
    %v252 = vmul.f32 %v249, %v251
    %v253 = vmul.f32 %v250, %v251
    %v254 = vperm.slane %v113, 2
    %v255 = vadd.f32 %v252, %v254
    %v256 = vadd.f32 %v253, %v254
    %v257 = vld [vmem:[#allocation8] sm:$0xff]
    %v258 = vld [vmem:[#allocation8 + $0x8] sm:$0xff]
    %v259 = vadd.f32 %v255, %v257
    %v260 = vadd.f32 %v256, %v258
    %v261 = vpack.c.bf16 %v259, %v259
    %v262 = vpack.c.bf16 %v260, %v260
    %263 = vst [vmem:[#allocation10] sm:$0xf] %v261
    %264 = vst [vmem:[#allocation10 + $0x4] sm:$0xf] %v262
    // Predicated region
    $region34: #{tpu_custom_call.1} parent=1 // pred_check
      _
    $region35: #{tpu_custom_call.1} parent=1 // pred_check_branch
      %266 = sbr.rel (0) target = $region37
    $region36: #{tpu_custom_call.1} parent=1 // pred_region
      %268 = vsyncadd [#allocation4], 0
      %s269 = sshll.u32 [#allocation10], 4
      %s270 = int_to_ptr.vmem [resolvable:$true] %s269
      %s271 = sshll.u32 %s4, 4
      %s272 = int_to_ptr.hbm [resolvable:$true] %s271
      %277 = dma.vmem_to_hbm [thread:$0]  %s270, 128, %s272, [#allocation4], 64, 64, 4
    $region37: #{tpu_custom_call.1} parent=1 // pred_fallthru
      _
    // Predicated region
    $region38: #{tpu_custom_call.1} parent=1 // pred_check
      _
    $region39: #{tpu_custom_call.1} parent=1 // pred_check_branch
      %279 = sbr.rel (0) target = $region41
    $region40: #{tpu_custom_call.1} parent=1 // pred_region
      %281 = dma.done [#allocation4], 128
    $region41: #{tpu_custom_call.1} parent=1 // pred_fallthru
      _
    %282 = vsyncpa [#allocation3], 1
    %283 = vsyncpa [#allocation6], 1
    %284 = vsyncpa [#allocation9], 1
    %285 = vsyncpa [#allocation4], 1

</llo_original>
